<compile_context>
chip_gen: v7x
topology: tpu7x:2x2x1
jax: 0.10.0
libtpu: 0.0.40
codegen_flags: <defaults>
</compile_context>

<pallas_src>
import functools

import jax
import jax.numpy as jnp
import numpy as np
from jax import lax
from jax.experimental import pallas as pl
from jax.experimental.pallas import tpu as pltpu

HEIGHT = 4  # self.up = ConvTranspose2d(in_channels * 4, ...) forces burst size 4


def agu_kernel(x_ref, halo_ref, wdu_ref, watt2_ref, wblk_ref, out_ref, *, W):
    # x_ref    : (1, hgt, C, TN)  f32  this row-tile, pixels flattened on lanes
    # halo_ref : (1, hgt, C, HB)  f32  starts at the first pixel of the NEXT tile
    # wdu_ref  : (d, C)           bf16 conv_du 1x1 weight
    # watt2_ref: (hgt*C, d)       bf16 all `height` attention 1x1 weights, h-major
    # wblk_ref : (4C, 4K)         bf16 parity-packed ConvTranspose2d weight
    # out_ref  : (1, 4C, TN)      bf16 rows = parity*C + c, parities [ee,eo,oe,oo]
    x = x_ref[0]                                      # (hgt, C, TN) f32
    hgt, C, TN = x.shape
    K = hgt * C

    # Halo = the image row directly below this tile (its first W lanes).  On the
    # last row-tile those pixels are below the image -> zero them; that also
    # zeroes the bottom-row contribution of the +W / +(W+1) shifts further down.
    is_last_tile = pl.program_id(1) == pl.num_programs(1) - 1
    halo = halo_ref[0] * jnp.where(is_last_tile, 0.0, 1.0)        # (hgt, C, HB)
    xe = jnp.concatenate([x, halo], axis=-1)          # (hgt, C, TX), TX = TN + HB
    TX = xe.shape[-1]

    # --- burst sum + conv_du (1x1 conv == channel matmul) + LeakyReLU(0.2) ----
    feats_u = jnp.sum(xe, axis=0)                     # (C, TX) f32
    z = jnp.dot(wdu_ref[...], feats_u.astype(jnp.bfloat16),
                preferred_element_type=jnp.float32)   # (d, TX) f32
    z = jnp.where(z >= 0, z, 0.2 * z)

    # --- all `height` attention 1x1 convs as ONE matmul, softmax over burst ---
    logits = jnp.dot(watt2_ref[...], z.astype(jnp.bfloat16),
                     preferred_element_type=jnp.float32)          # (hgt*C, TX)
    ls = [logits[h * C:(h + 1) * C] for h in range(hgt)]  # sublane-group slices
    m = functools.reduce(jnp.maximum, ls)
    es = [jnp.exp(l - m) for l in ls]
    inv = 1.0 / functools.reduce(jnp.add, es)
    # feats_V, h-major channel packing (row = h*C + c) == torch .view(B, h*C, H, W);
    # bf16 from here on halves vreg / ld-st pressure on the big (K, TX) arrays.
    vb = jnp.concatenate([xe[h] * (es[h] * inv) for h in range(hgt)],
                         axis=0).astype(jnp.bfloat16)             # (K, TX)

    # --- ConvTranspose2d as ONE fused block matmul ----------------------------
    # Single masked right-shift; the +W and +(W+1) shifts are just lane offsets
    # into vb / vr because the halo row is appended after the tile.
    # (pltpu.roll on the XLU would also work on HW; slice+concat is kept here
    #  for interpreter portability.)
    col = lax.broadcasted_iota(jnp.int32, (1, TX), 1) % W         # in-kernel mask
    not_last_col = col != (W - 1)
    vr = jnp.where(not_last_col,
                   jnp.concatenate([vb[:, 1:], jnp.zeros((K, 1), vb.dtype)],
                                   axis=-1),
                   jnp.zeros((), vb.dtype))                       # v[i, j+1]

    a = jnp.concatenate([vb[:, :TN],           # v[i,   j  ]
                         vr[:, :TN],           # v[i,   j+1]
                         vb[:, W:W + TN],      # v[i+1, j  ]
                         vr[:, W:W + TN]],     # v[i+1, j+1]
                        axis=0)                                   # (4K, TN) bf16
    y = jnp.dot(wblk_ref[...], a, preferred_element_type=jnp.float32)  # (4C, TN)
    out_ref[0] = y.astype(out_ref.dtype)              # single lane-dense bf16 store


def _pack_up_weight(w_up):
    """Pack the (3, 3, K, C) ConvTranspose2d taps into a (4C, 4K) block matrix.

    Column groups (4K): the four shifted inputs [v(i,j), v(i,j+1), v(i+1,j),
                        v(i+1,j+1)] (K columns each).
    Row groups (4C)   : the four output parities [ee, eo, oe, oo] (C rows each).
    """
    K, C = w_up.shape[2], w_up.shape[3]
    z = jnp.zeros((K, C), w_up.dtype)
    w = w_up
    blk_v0 = jnp.concatenate([w[1, 1], w[1, 2], w[2, 1], w[2, 2]], axis=1)
    blk_vr = jnp.concatenate([z,       w[1, 0], z,       w[2, 0]], axis=1)
    blk_vd = jnp.concatenate([z,       z,       w[0, 1], w[0, 2]], axis=1)
    blk_vdr = jnp.concatenate([z,      z,       z,       w[0, 0]], axis=1)
    wblk = jnp.concatenate([blk_v0, blk_vr, blk_vd, blk_vdr], axis=0)  # (4K, 4C)
    return wblk.T                                                      # (4C, 4K)


@functools.partial(jax.jit, static_argnames=("max_tile_pixels",))
def agu_forward(inp, w_du, w_att, w_up, *, max_tile_pixels=4096):
    # inp  : (B, hgt, C, H, W) f32   (PyTorch layout)
    # w_du : (d, C)                  conv_du 1x1 weight
    # w_att: (hgt, C, d)             the `height` attention 1x1 conv weights
    # w_up : (3, 3, K, C)            ConvTranspose2d weight (HWIO), K = hgt*C
    B, hgt, C, H, W = inp.shape
    d = w_du.shape[0]
    K = hgt * C
    N = H * W

    # Halo width: the next image row, rounded up to whole lane tiles.
    HB = min(N, 128 * pl.cdiv(W, 128))
    # Row-tile: largest TR with H % TR == 0, lane-dense tiles ((TR*W) % HB == 0,
    # HB is a multiple of 128) and TR*W <= max_tile_pixels.  v7x's 64 MiB VMEM is
    # the binding budget -> keep a few K pixels/tile; v6e/v5e can pass a larger
    # max_tile_pixels.  Falls back to one tile per image for tiny inputs.
    cands = [t for t in range(1, H + 1)
             if H % t == 0 and (t * W) % HB == 0 and t * W <= max_tile_pixels]
    TR = max(cands) if cands else H
    TN = TR * W
    nR = H // TR
    n_halo_blocks = pl.cdiv(N, HB)

    inp_flat = inp.reshape(B, hgt, C, N)              # free trailing-dim merge
    wdu_b = w_du.astype(jnp.bfloat16)
    watt2_b = w_att.reshape(hgt * C, d).astype(jnp.bfloat16)
    wblk_b = _pack_up_weight(w_up).astype(jnp.bfloat16)     # (4C, 4K)

    def halo_index_map(b, r):
        # First pixel of the next row-tile; clamped in-bounds for the last tile
        # (its contents are zeroed inside the kernel anyway).
        return (b, 0, 0, jnp.minimum((r + 1) * (TN // HB), n_halo_blocks - 1))

    cost = pl.CostEstimate(
        flops=2 * B * N * (C * d + hgt * C * d + (4 * K) * (4 * C)),
        transcendentals=B * N * K,
        bytes_accessed=4 * inp.size + 2 * B * 4 * C * N
        + 2 * (wdu_b.size + watt2_b.size + wblk_b.size))

    # TODO(synk): if the upstream producer can emit bf16 activations, accept a
    # bf16 `inp` directly to halve input HBM traffic (math stays f32 in-kernel).
    par = pl.pallas_call(
        functools.partial(agu_kernel, W=W),
        out_shape=jax.ShapeDtypeStruct((B, 4 * C, N), jnp.bfloat16),
        grid=(B, nR),
        in_specs=[
            pl.BlockSpec((1, hgt, C, TN), lambda b, r: (b, 0, 0, r)),
            pl.BlockSpec((1, hgt, C, HB), halo_index_map),
            pl.BlockSpec((d, C), lambda b, r: (0, 0)),
            pl.BlockSpec((hgt * C, d), lambda b, r: (0, 0)),
            pl.BlockSpec((4 * C, 4 * K), lambda b, r: (0, 0)),
        ],
        out_specs=pl.BlockSpec((1, 4 * C, TN), lambda b, r: (b, 0, r)),
        compiler_params=pltpu.CompilerParams(
            dimension_semantics=("parallel", "parallel"),
            vmem_limit_bytes=32 * 1024 * 1024),
        cost_estimate=cost,
    )(inp_flat, inp_flat, wdu_b, watt2_b, wblk_b)

    # Glue: interleave the four parities [ee, eo, oe, oo] into (B, C, 2H, 2W).
    # The output stays bf16 through the transpose; the f32 cast fuses into the
    # same XLA copy (drop .astype if the consumer accepts bf16).
    par = par.reshape(B, 2, 2, C, H, W)               # (B, pi, pj, C, H, W)
    out = jnp.transpose(par, (0, 3, 4, 1, 5, 2)).astype(jnp.float32)
    return out.reshape(B, C, 2 * H, 2 * W)


def agu_reference(inp, w_du, w_att, w_up):
    """Pure-JAX reference reproducing the PyTorch AGU forward (channels-first)."""
    B, hgt, C, H, W = inp.shape
    prec = lax.Precision.HIGHEST
    feats_u = jnp.sum(inp, axis=1)                                   # (B,C,H,W)
    z = jnp.einsum('bchw,dc->bdhw', feats_u, w_du, precision=prec)
    z = jnp.where(z >= 0, z, 0.2 * z)
    logits = jnp.einsum('bdhw,kcd->bkchw', z, w_att, precision=prec)
    attn = jax.nn.softmax(logits, axis=1)                            # (B,hgt,C,H,W)
    v = (inp * attn).reshape(B, hgt * C, H, W)
    # ConvTranspose2d(s=2, p=1, op=1, k=3) == lhs-dilated conv w/ flipped kernel
    return lax.conv_general_dilated(
        v, w_up[::-1, ::-1, :, :],
        window_strides=(1, 1), padding=((1, 2), (1, 2)), lhs_dilation=(2, 2),
        dimension_numbers=('NCHW', 'HWIO', 'NCHW'), precision=prec)


if __name__ == "__main__":
    B, C, H, W = 2, 8, 16, 16
    hgt = HEIGHT
    d = max(C // 8, 4)          # max(int(in_channels / reduction), 4)
    K = hgt * C

    key = jax.random.PRNGKey(0)
    k1, k2, k3, k4 = jax.random.split(key, 4)
    inp = jax.random.normal(k1, (B, hgt, C, H, W), jnp.float32) * 0.5
    w_du = jax.random.normal(k2, (d, C), jnp.float32) * 0.3
    w_att = jax.random.normal(k3, (hgt, C, d), jnp.float32) * 0.3
    w_up = jax.random.normal(k4, (3, 3, K, C), jnp.float32) * 0.2

    ref = jax.block_until_ready(agu_reference(inp, w_du, w_att, w_up))

    # Default tile budget -> one row-tile per image at this toy size.
    out1 = jax.block_until_ready(agu_forward(inp, w_du, w_att, w_up))
    # Force two row-tiles per image to also exercise the halo / spatial-grid path.
    out2 = jax.block_until_ready(
        agu_forward(inp, w_du, w_att, w_up, max_tile_pixels=128))

    for out in (out1, out2):
        assert out.shape == (B, C, 2 * H, 2 * W)
        np.testing.assert_allclose(np.asarray(out), np.asarray(ref),
                                   rtol=3e-2, atol=3e-2)
    print("KERNEL_OK")
</pallas_src>

<mosaic_0001>
module attributes {stable_mosaic.version = 11 : i64} {
  func.func @agu_kernel(%arg0: i32, %arg1: i32, %arg2: memref<1x4x8x256xf32, #tpu.memory_space<vmem>>, %arg3: memref<1x4x8x128xf32, #tpu.memory_space<vmem>>, %arg4: memref<4x8xbf16, #tpu.memory_space<vmem>>, %arg5: memref<32x4xbf16, #tpu.memory_space<vmem>>, %arg6: memref<32x128xbf16, #tpu.memory_space<vmem>>, %arg7: memref<1x32x256xbf16, #tpu.memory_space<vmem>>) attributes {dimension_semantics = [#tpu.dimension_semantics<parallel>, #tpu.dimension_semantics<parallel>], iteration_bounds = array<i64: 2, 1>, scalar_prefetch = 0 : i64, scratch_operands = 0 : i64, tpu.core_type = #tpu.core_type<tc>, window_params = [{transform_indices = @transform_0, window_bounds = array<i64: 1, 4, 8, 256>}, {transform_indices = @transform_1, window_bounds = array<i64: 1, 4, 8, 128>}, {pipeline_mode = #tpu.pipeline_mode<synchronous>, transform_indices = @transform_2, window_bounds = array<i64: 4, 8>}, {pipeline_mode = #tpu.pipeline_mode<synchronous>, transform_indices = @transform_3, window_bounds = array<i64: 32, 4>}, {pipeline_mode = #tpu.pipeline_mode<synchronous>, transform_indices = @transform_4, window_bounds = array<i64: 32, 128>}, {transform_indices = @transform_5, window_bounds = array<i64: 1, 32, 256>}]} {
    %c0 = arith.constant 0 : index
    %c0_0 = arith.constant 0 : index
    %c0_1 = arith.constant 0 : index
    %c0_2 = arith.constant 0 : index
    %0 = vector.load %arg2[%c0, %c0_0, %c0_1, %c0_2] : memref<1x4x8x256xf32, #tpu.memory_space<vmem>>, vector<1x4x8x256xf32>
    %1 = vector.shape_cast %0 : vector<1x4x8x256xf32> to vector<4x8x256xf32>
    %c0_i32 = arith.constant 0 : i32
    %2 = arith.cmpi eq, %arg1, %c0_i32 : i32
    %c0_3 = arith.constant 0 : index
    %c0_4 = arith.constant 0 : index
    %c0_5 = arith.constant 0 : index
    %c0_6 = arith.constant 0 : index
    %3 = vector.load %arg3[%c0_3, %c0_4, %c0_5, %c0_6] : memref<1x4x8x128xf32, #tpu.memory_space<vmem>>, vector<1x4x8x128xf32>
    %4 = vector.shape_cast %3 : vector<1x4x8x128xf32> to vector<4x8x128xf32>
    %cst = arith.constant 0.000000e+00 : f32
    %cst_7 = arith.constant 1.000000e+00 : f32
    %5 = arith.select %2, %cst, %cst_7 : f32
    %6 = vector.broadcast %5 : f32 to vector<4x8x128xf32>
    %7 = arith.mulf %4, %6 : vector<4x8x128xf32>
    %8 = tpu.concatenate %1, %7 in 2 : vector<4x8x256xf32>, vector<4x8x128xf32> -> vector<4x8x384xf32>
    %cst_8 = arith.constant dense<0.000000e+00> : vector<8x384xf32>
    %9 = vector.multi_reduction <add>, %8, %cst_8 [0] : vector<4x8x384xf32> to vector<8x384xf32>
    %c0_9 = arith.constant 0 : index
    %c0_10 = arith.constant 0 : index
    %10 = vector.load %arg4[%c0_9, %c0_10] : memref<4x8xbf16, #tpu.memory_space<vmem>>, vector<4x8xbf16>
    %11 = arith.truncf %9 : vector<8x384xf32> to vector<8x384xbf16>
    %cst_11 = arith.constant dense<0.000000e+00> : vector<4x384xf32>
    %12 = tpu.matmul %10, %11, %cst_11 {dimension_numbers = #tpu.dot_dimension_numbers<[1], [0], [0], [1], [0, 0, 1, 1], [], []>} : vector<4x8xbf16>, vector<8x384xbf16>, vector<4x384xf32> -> vector<4x384xf32>
    %cst_12 = arith.constant 0.000000e+00 : f32
    %13 = vector.broadcast %cst_12 : f32 to vector<4x384xf32>
    %14 = arith.cmpf oge, %12, %13 : vector<4x384xf32>
    %cst_13 = arith.constant 2.000000e-01 : f32
    %15 = vector.broadcast %cst_13 : f32 to vector<4x384xf32>
    %16 = arith.mulf %15, %12 : vector<4x384xf32>
    %17 = arith.select %14, %12, %16 : vector<4x384xi1>, vector<4x384xf32>
    %c0_14 = arith.constant 0 : index
    %c0_15 = arith.constant 0 : index
    %18 = vector.load %arg5[%c0_14, %c0_15] : memref<32x4xbf16, #tpu.memory_space<vmem>>, vector<32x4xbf16>
    %19 = arith.truncf %17 : vector<4x384xf32> to vector<4x384xbf16>
    %cst_16 = arith.constant dense<0.000000e+00> : vector<32x384xf32>
    %20 = tpu.matmul %18, %19, %cst_16 {dimension_numbers = #tpu.dot_dimension_numbers<[1], [0], [0], [1], [0, 0, 1, 1], [], []>} : vector<32x4xbf16>, vector<4x384xbf16>, vector<32x384xf32> -> vector<32x384xf32>
    %21 = vector.extract_strided_slice %20 {offsets = [0, 0], sizes = [8, 384], strides = [1, 1]} : vector<32x384xf32> to vector<8x384xf32>
    %22 = vector.extract_strided_slice %20 {offsets = [8, 0], sizes = [8, 384], strides = [1, 1]} : vector<32x384xf32> to vector<8x384xf32>
    %23 = vector.extract_strided_slice %20 {offsets = [16, 0], sizes = [8, 384], strides = [1, 1]} : vector<32x384xf32> to vector<8x384xf32>
    %24 = vector.extract_strided_slice %20 {offsets = [24, 0], sizes = [8, 384], strides = [1, 1]} : vector<32x384xf32> to vector<8x384xf32>
    %25 = arith.maximumf %21, %22 : vector<8x384xf32>
    %26 = arith.maximumf %25, %23 : vector<8x384xf32>
    %27 = arith.maximumf %26, %24 : vector<8x384xf32>
    %28 = arith.subf %21, %27 : vector<8x384xf32>
    %29 = math.exp %28 : vector<8x384xf32>
    %30 = arith.subf %22, %27 : vector<8x384xf32>
    %31 = math.exp %30 : vector<8x384xf32>
    %32 = arith.subf %23, %27 : vector<8x384xf32>
    %33 = math.exp %32 : vector<8x384xf32>
    %34 = arith.subf %24, %27 : vector<8x384xf32>
    %35 = math.exp %34 : vector<8x384xf32>
    %36 = arith.addf %29, %31 : vector<8x384xf32>
    %37 = arith.addf %36, %33 : vector<8x384xf32>
    %38 = arith.addf %37, %35 : vector<8x384xf32>
    %cst_17 = arith.constant 1.000000e+00 : f32
    %39 = vector.broadcast %cst_17 : f32 to vector<8x384xf32>
    %40 = arith.divf %39, %38 : vector<8x384xf32>
    %41 = vector.extract_strided_slice %8 {offsets = [0, 0, 0], sizes = [1, 8, 384], strides = [1, 1, 1]} : vector<4x8x384xf32> to vector<1x8x384xf32>
    %42 = vector.shape_cast %41 : vector<1x8x384xf32> to vector<8x384xf32>
    %43 = arith.mulf %29, %40 : vector<8x384xf32>
    %44 = arith.mulf %42, %43 : vector<8x384xf32>
    %45 = vector.extract_strided_slice %8 {offsets = [1, 0, 0], sizes = [1, 8, 384], strides = [1, 1, 1]} : vector<4x8x384xf32> to vector<1x8x384xf32>
    %46 = vector.shape_cast %45 : vector<1x8x384xf32> to vector<8x384xf32>
    %47 = arith.mulf %31, %40 : vector<8x384xf32>
    %48 = arith.mulf %46, %47 : vector<8x384xf32>
    %49 = vector.extract_strided_slice %8 {offsets = [2, 0, 0], sizes = [1, 8, 384], strides = [1, 1, 1]} : vector<4x8x384xf32> to vector<1x8x384xf32>
    %50 = vector.shape_cast %49 : vector<1x8x384xf32> to vector<8x384xf32>
    %51 = arith.mulf %33, %40 : vector<8x384xf32>
    %52 = arith.mulf %50, %51 : vector<8x384xf32>
    %53 = vector.extract_strided_slice %8 {offsets = [3, 0, 0], sizes = [1, 8, 384], strides = [1, 1, 1]} : vector<4x8x384xf32> to vector<1x8x384xf32>
    %54 = vector.shape_cast %53 : vector<1x8x384xf32> to vector<8x384xf32>
    %55 = arith.mulf %35, %40 : vector<8x384xf32>
    %56 = arith.mulf %54, %55 : vector<8x384xf32>
    %57 = tpu.concatenate %44, %48, %52, %56 in 0 : vector<8x384xf32>, vector<8x384xf32>, vector<8x384xf32>, vector<8x384xf32> -> vector<32x384xf32>
    %58 = arith.truncf %57 : vector<32x384xf32> to vector<32x384xbf16>
    %59 = tpu.iota {dimensions = array<i32: 1>} : vector<1x384xi32>
    %c16_i32 = arith.constant 16 : i32
    %c0_i32_18 = arith.constant 0 : i32
    %60 = arith.cmpi eq, %c16_i32, %c0_i32_18 : i32
    %c1_i32 = arith.constant 1 : i32
    %61 = arith.select %60, %c1_i32, %c16_i32 : i32
    %62 = vector.broadcast %61 : i32 to vector<1x384xi32>
    %63 = arith.remsi %59, %62 : vector<1x384xi32>
    %c0_i32_19 = arith.constant 0 : i32
    %64 = vector.broadcast %c0_i32_19 : i32 to vector<1x384xi32>
    %65 = arith.cmpi ne, %63, %64 : vector<1x384xi32>
    %c0_i32_20 = arith.constant 0 : i32
    %66 = vector.broadcast %c0_i32_20 : i32 to vector<1x384xi32>
    %67 = arith.cmpi slt, %63, %66 : vector<1x384xi32>
    %c0_i32_21 = arith.constant 0 : i32
    %68 = arith.cmpi slt, %61, %c0_i32_21 : i32
    %69 = vector.broadcast %68 : i1 to vector<1x384xi1>
    %70 = vector.broadcast %69 : vector<1x384xi1> to vector<1x384xi1>
    %71 = arith.xori %67, %70 : vector<1x384xi1>
    %72 = arith.andi %71, %65 : vector<1x384xi1>
    %73 = vector.broadcast %61 : i32 to vector<1x384xi32>
    %74 = arith.addi %63, %73 : vector<1x384xi32>
    %75 = arith.select %72, %74, %63 : vector<1x384xi1>, vector<1x384xi32>
    %c15_i32 = arith.constant 15 : i32
    %76 = vector.broadcast %c15_i32 : i32 to vector<1x384xi32>
    %77 = arith.cmpi ne, %75, %76 : vector<1x384xi32>
    %78 = vector.extract_strided_slice %58 {offsets = [0, 1], sizes = [32, 383], strides = [1, 1]} : vector<32x384xbf16> to vector<32x383xbf16>
    %cst_22 = arith.constant 0.000000e+00 : bf16
    %79 = vector.broadcast %cst_22 : bf16 to vector<32x1xbf16>
    %80 = tpu.concatenate %78, %79 in 1 : vector<32x383xbf16>, vector<32x1xbf16> -> vector<32x384xbf16>
    %cst_23 = arith.constant 0.000000e+00 : bf16
    %81 = vector.shape_cast %77 : vector<1x384xi1> to vector<1x384xi1>
    %82 = vector.broadcast %81 : vector<1x384xi1> to vector<32x384xi1>
    %83 = vector.broadcast %cst_23 : bf16 to vector<32x384xbf16>
    %84 = arith.select %82, %80, %83 : vector<32x384xi1>, vector<32x384xbf16>
    %85 = vector.extract_strided_slice %58 {offsets = [0, 0], sizes = [32, 256], strides = [1, 1]} : vector<32x384xbf16> to vector<32x256xbf16>
    %86 = vector.extract_strided_slice %84 {offsets = [0, 0], sizes = [32, 256], strides = [1, 1]} : vector<32x384xbf16> to vector<32x256xbf16>
    %87 = vector.extract_strided_slice %58 {offsets = [0, 16], sizes = [32, 256], strides = [1, 1]} : vector<32x384xbf16> to vector<32x256xbf16>
    %88 = vector.extract_strided_slice %84 {offsets = [0, 16], sizes = [32, 256], strides = [1, 1]} : vector<32x384xbf16> to vector<32x256xbf16>
    %89 = tpu.concatenate %85, %86, %87, %88 in 0 : vector<32x256xbf16>, vector<32x256xbf16>, vector<32x256xbf16>, vector<32x256xbf16> -> vector<128x256xbf16>
    %c0_24 = arith.constant 0 : index
    %c0_25 = arith.constant 0 : index
    %90 = vector.load %arg6[%c0_24, %c0_25] : memref<32x128xbf16, #tpu.memory_space<vmem>>, vector<32x128xbf16>
    %cst_26 = arith.constant dense<0.000000e+00> : vector<32x256xf32>
    %91 = tpu.matmul %90, %89, %cst_26 {dimension_numbers = #tpu.dot_dimension_numbers<[1], [0], [0], [1], [0, 0, 1, 1], [], []>} : vector<32x128xbf16>, vector<128x256xbf16>, vector<32x256xf32> -> vector<32x256xf32>
    %92 = arith.truncf %91 : vector<32x256xf32> to vector<32x256xbf16>
    %c0_27 = arith.constant 0 : index
    %c0_28 = arith.constant 0 : index
    %c0_29 = arith.constant 0 : index
    %93 = vector.load %arg7[%c0_27, %c0_28, %c0_29] : memref<1x32x256xbf16, #tpu.memory_space<vmem>>, vector<1x32x256xbf16>
    %94 = vector.shape_cast %93 : vector<1x32x256xbf16> to vector<32x256xbf16>
    %95 = vector.shape_cast %92 : vector<32x256xbf16> to vector<1x32x256xbf16>
    tpu.vector_store %arg7[%c0_27, %c0_28, %c0_29], %95 {strides = array<i32>} : memref<1x32x256xbf16, #tpu.memory_space<vmem>>, vector<1x32x256xbf16>,
    return
  }
  func.func @transform_0(%arg0: i32, %arg1: i32) -> (i32, i32, i32, i32) {
    %c0_i32 = arith.constant 0 : i32
    %c0_i32_0 = arith.constant 0 : i32
    %c0_i32_1 = arith.constant 0 : i32
    return %arg0, %c0_i32, %c0_i32_0, %arg1 : i32, i32, i32, i32
  }
  func.func @transform_1(%arg0: i32, %arg1: i32) -> (i32, i32, i32, i32) {
    %c1_i32 = arith.constant 1 : i32
    %0 = arith.addi %arg1, %c1_i32 : i32
    %c2_i32 = arith.constant 2 : i32
    %1 = arith.muli %0, %c2_i32 : i32
    %c1_i32_0 = arith.constant 1 : i32
    %2 = arith.minsi %1, %c1_i32_0 : i32
    %c0_i32 = arith.constant 0 : i32
    %c0_i32_1 = arith.constant 0 : i32
    %c0_i32_2 = arith.constant 0 : i32
    return %arg0, %c0_i32, %c0_i32_1, %2 : i32, i32, i32, i32
  }
  func.func @transform_2(%arg0: i32, %arg1: i32) -> (i32, i32) {
    %c0_i32 = arith.constant 0 : i32
    %c0_i32_0 = arith.constant 0 : i32
    %c0_i32_1 = arith.constant 0 : i32
    return %c0_i32, %c0_i32_0 : i32, i32
  }
  func.func @transform_3(%arg0: i32, %arg1: i32) -> (i32, i32) {
    %c0_i32 = arith.constant 0 : i32
    %c0_i32_0 = arith.constant 0 : i32
    %c0_i32_1 = arith.constant 0 : i32
    return %c0_i32, %c0_i32_0 : i32, i32
  }
  func.func @transform_4(%arg0: i32, %arg1: i32) -> (i32, i32) {
    %c0_i32 = arith.constant 0 : i32
    %c0_i32_0 = arith.constant 0 : i32
    %c0_i32_1 = arith.constant 0 : i32
    return %c0_i32, %c0_i32_0 : i32, i32
  }
  func.func @transform_5(%arg0: i32, %arg1: i32) -> (i32, i32, i32) {
    %c0_i32 = arith.constant 0 : i32
    %c0_i32_0 = arith.constant 0 : i32
    return %arg0, %c0_i32, %arg1 : i32, i32, i32
  }
}

</mosaic_0001>

<llo_original>
// kernel: agu_forward.1
$region0: #{agu_forward.1}
  #allocation0 [shape = 'u32[]', space=smem, size = 0x4, offset = 0x4, fixed_abs, tag = 'smem constant byte address 0x4 - core index']
  #allocation1 [shape = 'u32[144,128]{1,0:T(1,128)}', space=vmem, size = 0x12000, scoped, tag = 'internal scratch']
  %s0 = inlined_call_operand.vmem [shape: f32[2,4,8,256], index: 0, kind: input, shape index: {}, may-alias: {0,1}]
  %s1 = inlined_call_operand.vmem [shape: f32[2,4,8,256], index: 1, kind: input, shape index: {}, may-alias: {0,1}]
  %s2 = inlined_call_operand.vmem [shape: bf16[4,8], index: 2, kind: input, shape index: {}]
  %s3 = inlined_call_operand.vmem [shape: bf16[32,4], index: 3, kind: input, shape index: {}]
  %s4 = inlined_call_operand.vmem [shape: bf16[32,128], index: 4, kind: input, shape index: {}]
  %s5 = inlined_call_operand.vmem [shape: bf16[2,32,256], index: 5, kind: output, shape index: {}]
  %s6 = sld [smem:[#allocation0]]
  $region91: #{agu_forward.1} parent=0
    _
  %s8 = ssub.s32 1, %s6
  %s9 = scalar_select 0, %s8, %s6
  $region1: #{agu_forward.1} parent=0
    #allocation2 [shape = 'u8[32768]{0}', space=vmem, size = 0x8000, scoped, tag = 'input window, operand 1']
    loop: start=0, step=1, limit=4
    $region2: #{agu_forward.1} parent=1 // loop_pre_header
      _
    $region3: #{agu_forward.1} parent=1 // loop_header
      %s11 = sphi 0, %s15
      %p12 = scmp.ge.s32.totalorder %s11, 4
      %s18 = sphi 0, %s30
      %s19 = sphi 0, %s26
      %s20 = sphi 0, %s18
      %s21 = sphi 0, %s19
      %s22 = sphi 0, %s20
      %s23 = sphi 0, %s21
      %s35 = sphi 0, %s37
      %s38 = sphi 0, %s35
      %s39 = sphi 0, %s38
      %s55 = sphi 0, %s39
      %s71 = sphi 0, %s73
      %s74 = sphi 0, %s71
      %s75 = sphi 0, %s74
      %s91 = sphi 0, %s75
      %s95 = sphi 0, %s95
      %s97 = sphi 0, %s95
      %s98 = sphi 0, %s97
      %s112 = sphi 0, %s98
      %s116 = sphi 0, %s116
      %s118 = sphi 0, %s116
      %s119 = sphi 0, %s118
      %s133 = sphi 0, %s119
      %s137 = sphi 0, %s137
      %s139 = sphi 0, %s137
      %s140 = sphi 0, %s139
      %s154 = sphi 0, %s140
      %s162 = sphi 0, %s164
      %s165 = sphi 0, %s162
      %s166 = sphi 0, %s165
      %s182 = sphi 0, %s166
    $region4: #{agu_forward.1} parent=1 // loop_header_branch
      %14 = sbr.rel (%p12) target = $region8
    $region5: #{agu_forward.1} parent=1 // loop_body
      %s16 = ssub.s32 %s11, 1
      %s17 = ssub.s32 %s11, 2
      %s24 = sadd.s32 1, %s19
      %p25 = scmp.ge.s32.totalorder %s24, 1
      %s26 = scalar_select %p25, 0, %s24
      %s27 = sadd.s32 1, %s18
      %s28 = scalar_select %p25, %s27, %s18
      %p29 = scmp.ge.s32.totalorder %s28, 2
      %s30 = scalar_select %p29, 0, %s28
      %s31 = ssub.s32 %s18, %s30
      %s32 = ssub.s32 %s19, %s26
      %s33 = sor.u32 %s31, %s32
      %p34 = scmp.eq.s32.totalorder %s33, 0
      %s36 = sadd.s32 %s35, 1
      %s37 = scalar_select %p34, %s35, %s36
      %p40 = pneg %p34
      %p41 = scmp.eq.s32.totalorder %s11, 1
      %p42 = por %p40, %p41
      %p43 = scmp.ne.s32.totalorder %s35, %s38
      %p44 = scmp.eq.s32.totalorder %s11, 0
      %p45 = por %p43, %p44
      %p46 = scmp.ne.s32.totalorder %s35, %s38
      %p47 = scmp.eq.s32.totalorder %s16, 1
      %p48 = por %p46, %p47
      %p49 = scmp.ne.s32.totalorder %s38, %s39
      %p50 = scmp.eq.s32.totalorder %s16, 0
      %p51 = por %p49, %p50
      %p52 = scmp.ne.s32.totalorder %s38, %s39
      %p53 = scmp.eq.s32.totalorder %s17, 1
      %p54 = por %p52, %p53
      %p56 = scmp.ne.s32.totalorder %s39, %s55
      %p57 = scmp.eq.s32.totalorder %s17, 0
      %p58 = por %p56, %p57
      %s59 = sadd.s32 %s19, 1
      %s60 = smul.u32 %s59, 2
      %p61 = scmp.lt.s32.totalorder %s60, 1
      %s62 = scalar_select %p61, %s60, 1
      %s63 = sadd.s32 %s26, 1
      %s64 = smul.u32 %s63, 2
      %p65 = scmp.lt.s32.totalorder %s64, 1
      %s66 = scalar_select %p65, %s64, 1
      %s67 = ssub.s32 %s18, %s30
      %s68 = ssub.s32 %s62, %s66
      %s69 = sor.u32 %s67, %s68
      %p70 = scmp.eq.s32.totalorder %s69, 0
      %s72 = sadd.s32 %s71, 1
      %s73 = scalar_select %p70, %s71, %s72
      %p76 = pneg %p70
      %p77 = scmp.eq.s32.totalorder %s11, 1
      %p78 = por %p76, %p77
      %p79 = scmp.ne.s32.totalorder %s71, %s74
      %p80 = scmp.eq.s32.totalorder %s11, 0
      %p81 = por %p79, %p80
      %p82 = scmp.ne.s32.totalorder %s71, %s74
      %p83 = scmp.eq.s32.totalorder %s16, 1
      %p84 = por %p82, %p83
      %p85 = scmp.ne.s32.totalorder %s74, %s75
      %p86 = scmp.eq.s32.totalorder %s16, 0
      %p87 = por %p85, %p86
      %p88 = scmp.ne.s32.totalorder %s74, %s75
      %p89 = scmp.eq.s32.totalorder %s17, 1
      %p90 = por %p88, %p89
      %p92 = scmp.ne.s32.totalorder %s75, %s91
      %p93 = scmp.eq.s32.totalorder %s17, 0
      %p94 = por %p92, %p93
      %s96 = sadd.s32 %s95, 1
      %p99 = scmp.eq.s32.totalorder %s11, 1
      %p100 = scmp.ne.s32.totalorder %s95, %s97
      %p101 = scmp.eq.s32.totalorder %s11, 0
      %p102 = por %p100, %p101
      %p103 = scmp.ne.s32.totalorder %s95, %s97
      %p104 = scmp.eq.s32.totalorder %s16, 1
      %p105 = por %p103, %p104
      %p106 = scmp.ne.s32.totalorder %s97, %s98
      %p107 = scmp.eq.s32.totalorder %s16, 0
      %p108 = por %p106, %p107
      %p109 = scmp.ne.s32.totalorder %s97, %s98
      %p110 = scmp.eq.s32.totalorder %s17, 1
      %p111 = por %p109, %p110
      %p113 = scmp.ne.s32.totalorder %s98, %s112
      %p114 = scmp.eq.s32.totalorder %s17, 0
      %p115 = por %p113, %p114
      %s117 = sadd.s32 %s116, 1
      %p120 = scmp.eq.s32.totalorder %s11, 1
      %p121 = scmp.ne.s32.totalorder %s116, %s118
      %p122 = scmp.eq.s32.totalorder %s11, 0
      %p123 = por %p121, %p122
      %p124 = scmp.ne.s32.totalorder %s116, %s118
      %p125 = scmp.eq.s32.totalorder %s16, 1
      %p126 = por %p124, %p125
      %p127 = scmp.ne.s32.totalorder %s118, %s119
      %p128 = scmp.eq.s32.totalorder %s16, 0
      %p129 = por %p127, %p128
      %p130 = scmp.ne.s32.totalorder %s118, %s119
      %p131 = scmp.eq.s32.totalorder %s17, 1
      %p132 = por %p130, %p131
      %p134 = scmp.ne.s32.totalorder %s119, %s133
      %p135 = scmp.eq.s32.totalorder %s17, 0
      %p136 = por %p134, %p135
      %s138 = sadd.s32 %s137, 1
      %p141 = scmp.eq.s32.totalorder %s11, 1
      %p142 = scmp.ne.s32.totalorder %s137, %s139
      %p143 = scmp.eq.s32.totalorder %s11, 0
      %p144 = por %p142, %p143
      %p145 = scmp.ne.s32.totalorder %s137, %s139
      %p146 = scmp.eq.s32.totalorder %s16, 1
      %p147 = por %p145, %p146
      %p148 = scmp.ne.s32.totalorder %s139, %s140
      %p149 = scmp.eq.s32.totalorder %s16, 0
      %p150 = por %p148, %p149
      %p151 = scmp.ne.s32.totalorder %s139, %s140
      %p152 = scmp.eq.s32.totalorder %s17, 1
      %p153 = por %p151, %p152
      %p155 = scmp.ne.s32.totalorder %s140, %s154
      %p156 = scmp.eq.s32.totalorder %s17, 0
      %p157 = por %p155, %p156
      %s158 = ssub.s32 %s18, %s30
      %s159 = ssub.s32 %s19, %s26
      %s160 = sor.u32 %s158, %s159
      %p161 = scmp.eq.s32.totalorder %s160, 0
      %s163 = sadd.s32 %s162, 1
      %s164 = scalar_select %p161, %s162, %s163
      %p167 = pneg %p161
      %p168 = scmp.eq.s32.totalorder %s11, 1
      %p169 = por %p167, %p168
      %p170 = scmp.ne.s32.totalorder %s162, %s165
      %p171 = scmp.eq.s32.totalorder %s11, 0
      %p172 = por %p170, %p171
      %p173 = scmp.ne.s32.totalorder %s162, %s165
      %p174 = scmp.eq.s32.totalorder %s16, 1
      %p175 = por %p173, %p174
      %p176 = scmp.ne.s32.totalorder %s165, %s166
      %p177 = scmp.eq.s32.totalorder %s16, 0
      %p178 = por %p176, %p177
      %p179 = scmp.ne.s32.totalorder %s165, %s166
      %p180 = scmp.eq.s32.totalorder %s17, 1
      %p181 = por %p179, %p180
      %p183 = scmp.ne.s32.totalorder %s166, %s182
      %p184 = scmp.eq.s32.totalorder %s17, 0
      %p185 = por %p183, %p184
      %p186 = scmp.le.s32.totalorder 1, %s11
      %p187 = scmp.lt.s32.totalorder %s11, 3
      %p188 = pnand %p186, %p187
      %p189 = pneg %p188
      // Predicated region
      $region9: #{agu_forward.1} parent=5 // pred_check
        _
      $region10: #{agu_forward.1} parent=5 // pred_check_branch
        %191 = sbr.rel (%p188) target = $region12
      $region11: #{agu_forward.1} parent=5 // pred_region
        %s192 = ssub.s32 %s11, 1
        // Predicated region
        $region13: #{agu_forward.1} parent=11 // pred_check
          %p193 = pneg %p108
        $region14: #{agu_forward.1} parent=11 // pred_check_branch
          %195 = sbr.rel (%p193) target = $region16
        $region15: #{agu_forward.1} parent=11 // pred_region
          _
        $region16: #{agu_forward.1} parent=11 // pred_fallthru
          _
        // Predicated region
        $region17: #{agu_forward.1} parent=11 // pred_check
          %p196 = pneg %p129
        $region18: #{agu_forward.1} parent=11 // pred_check_branch
          %198 = sbr.rel (%p196) target = $region20
        $region19: #{agu_forward.1} parent=11 // pred_region
          _
        $region20: #{agu_forward.1} parent=11 // pred_fallthru
          _
        // Predicated region
        $region21: #{agu_forward.1} parent=11 // pred_check
          %p199 = pneg %p150
        $region22: #{agu_forward.1} parent=11 // pred_check_branch
          %201 = sbr.rel (%p199) target = $region24
        $region23: #{agu_forward.1} parent=11 // pred_region
          _
        $region24: #{agu_forward.1} parent=11 // pred_fallthru
          _
      $region12: #{agu_forward.1} parent=5 // pred_fallthru
        _
      %p202 = scmp.lt.s32.totalorder %s11, 2
      // Predicated region
      $region25: #{agu_forward.1} parent=5 // pred_check
        %p203 = pneg %p202
      $region26: #{agu_forward.1} parent=5 // pred_check_branch
        %205 = sbr.rel (%p203) target = $region28
      $region27: #{agu_forward.1} parent=5 // pred_region
        // Predicated region
        $region29: #{agu_forward.1} parent=27 // pred_check
          %p206 = pneg %p45
        $region30: #{agu_forward.1} parent=27 // pred_check_branch
          %208 = sbr.rel (%p206) target = $region32
        $region31: #{agu_forward.1} parent=27 // pred_region
          %s209 = smul.u32 2, %s19
          %p210 = scmp.lt.s32.totalorder %s18, 1
          %s211 = scalar_select %p210, %s18, 1
          %p212 = scmp.lt.s32.totalorder %s209, 1
          %s213 = scalar_select %p212, %s209, 1
          %s214 = smul.addr %s211, 8
          %s215 = sadd.s32 %s213, %s214
          %s216 = smul.addr %s215, 8
          %s217 = scalar_lea.vmem %s0, %s216
          %s218 = smul.u32 2, %s19
        $region32: #{agu_forward.1} parent=27 // pred_fallthru
          _
        // Predicated region
        $region33: #{agu_forward.1} parent=27 // pred_check
          %p219 = pneg %p81
        $region34: #{agu_forward.1} parent=27 // pred_check_branch
          %221 = sbr.rel (%p219) target = $region36
        $region35: #{agu_forward.1} parent=27 // pred_region
          %s222 = sand.u32 %s71, 1
          %s223 = sand.u32 %s71, 1
          %s224 = smul.addr %s223, 32
          %s225 = scalar_lea.vmem [#allocation2], %s224
          %s226 = sadd.s32 %s19, 1
          %s227 = smul.u32 %s226, 2
          %p228 = scmp.lt.s32.totalorder %s227, 1
          %s229 = scalar_select %p228, %s227, 1
          %s230 = smul.addr %s18, 8
          %s231 = sadd.s32 %s229, %s230
          %s232 = smul.addr %s231, 8
          %s233 = scalar_lea.vmem %s1, %s232
          // Predicated region
          $region37: #{agu_forward.1} parent=35 // pred_check
            _
          $region38: #{agu_forward.1} parent=35 // pred_check_branch
            %235 = sbr.rel (0) target = $region40
          $region39: #{agu_forward.1} parent=35 // pred_region
            // Predicated region
            $region41: #{agu_forward.1} parent=39 // pred_check
              _
            $region42: #{agu_forward.1} parent=39 // pred_check_branch
              %237 = sbr.rel (0) target = $region44
            $region43: #{agu_forward.1} parent=39 // pred_region
              // Predicated region
              $region56: #{agu_forward.1} parent=43 // pred_check
                _
              $region57: #{agu_forward.1} parent=43 // pred_check_branch
                %258 = sbr.rel (0) target = $region59
              $region58: #{agu_forward.1} parent=43 // pred_region
                loop: start=0, step=1, limit=1
                $region60: #{agu_forward.1} parent=58 // loop_pre_header
                  _
                $region61: #{agu_forward.1} parent=58 // loop_header
                  %s260 = sphi 0, %s264
                  %p261 = scmp.ge.s32.totalorder %s260, 1
                  %s265 = sphi %s233, %s233
                  %s266 = sphi %s225, %s225
                $region62: #{agu_forward.1} parent=58 // loop_header_branch
                  %263 = sbr.rel (%p261) target = $region66
                $region63: #{agu_forward.1} parent=58 // loop_body
                  %v267 = vld [vmem:[%s265] sm:$0xff]
                  %268 = vst [vmem:[%s266] sm:$0xff] %v267
                  %v269 = vld [vmem:[%s265 + $0x10] sm:$0xff]
                  %270 = vst [vmem:[%s266 + $0x8] sm:$0xff] %v269
                  %v271 = vld [vmem:[%s265 + $0x20] sm:$0xff]
                  %272 = vst [vmem:[%s266 + $0x10] sm:$0xff] %v271
                  %v273 = vld [vmem:[%s265 + $0x30] sm:$0xff]
                  %274 = vst [vmem:[%s266 + $0x18] sm:$0xff] %v273
                $region64: #{agu_forward.1} parent=58 // loop_footer
                  %s264 = sadd.s32 1, %s260
                $region65: #{agu_forward.1} parent=58 // loop_footer_branch
                  %259 = sbr.rel target = $region61
                $region66: #{agu_forward.1} parent=58 // loop_exit
                  _
              $region59: #{agu_forward.1} parent=43 // pred_fallthru
                _
              // Predicated region
              $region67: #{agu_forward.1} parent=43 // pred_check
                _
              $region68: #{agu_forward.1} parent=43 // pred_check_branch
                %276 = sbr.rel target = $region70
              $region69: #{agu_forward.1} parent=43 // pred_region
                _
              $region70: #{agu_forward.1} parent=43 // pred_fallthru
                _
            $region44: #{agu_forward.1} parent=39 // pred_fallthru
              _
            // Predicated region
            $region45: #{agu_forward.1} parent=39 // pred_check
              _
            $region46: #{agu_forward.1} parent=39 // pred_check_branch
              %239 = sbr.rel target = $region48
            $region47: #{agu_forward.1} parent=39 // pred_region
              loop: start=0, step=1, limit=1
              $region49: #{agu_forward.1} parent=47 // loop_pre_header
                _
              $region50: #{agu_forward.1} parent=47 // loop_header
                %s242 = sphi 0, %s246
                %p243 = scmp.ge.s32.totalorder %s242, 1
                %s247 = sphi %s233, %s233
                %s248 = sphi %s225, %s225
              $region51: #{agu_forward.1} parent=47 // loop_header_branch
                %245 = sbr.rel (%p243) target = $region55
              $region52: #{agu_forward.1} parent=47 // loop_body
                %v249 = vld [vmem:[%s247] sm:$0xff]
                %250 = vst [vmem:[%s248] sm:$0xff] %v249
                %v251 = vld [vmem:[%s247 + $0x10] sm:$0xff]
                %252 = vst [vmem:[%s248 + $0x8] sm:$0xff] %v251
                %v253 = vld [vmem:[%s247 + $0x20] sm:$0xff]
                %254 = vst [vmem:[%s248 + $0x10] sm:$0xff] %v253
                %v255 = vld [vmem:[%s247 + $0x30] sm:$0xff]
                %256 = vst [vmem:[%s248 + $0x18] sm:$0xff] %v255
              $region53: #{agu_forward.1} parent=47 // loop_footer
                %s246 = sadd.s32 1, %s242
              $region54: #{agu_forward.1} parent=47 // loop_footer_branch
                %241 = sbr.rel target = $region50
              $region55: #{agu_forward.1} parent=47 // loop_exit
                _
            $region48: #{agu_forward.1} parent=39 // pred_fallthru
              _
          $region40: #{agu_forward.1} parent=35 // pred_fallthru
            _
          %277 = vnop
        $region36: #{agu_forward.1} parent=27 // pred_fallthru
          _
      $region28: #{agu_forward.1} parent=5 // pred_fallthru
        _
      %p278 = scmp.le.s32.totalorder 1, %s11
      %p279 = scmp.lt.s32.totalorder %s11, 3
      %p280 = pnand %p278, %p279
      %p281 = pneg %p280
      // Predicated region
      $region71: #{agu_forward.1} parent=5 // pred_check
        _
      $region72: #{agu_forward.1} parent=5 // pred_check_branch
        %283 = sbr.rel (%p280) target = $region74
      $region73: #{agu_forward.1} parent=5 // pred_region
        %s284 = ssub.s32 %s11, 1
        %s285 = sand.u32 %s74, 1
        %s286 = sand.u32 %s74, 1
        %s287 = smul.addr %s286, 32
        %s288 = scalar_lea.vmem [#allocation2], %s287
        // Predicated region
        $region75: #{agu_forward.1} parent=73 // pred_check
          %p289 = pneg %p87
        $region76: #{agu_forward.1} parent=73 // pred_check_branch
          %291 = sbr.rel (%p289) target = $region78
        $region77: #{agu_forward.1} parent=73 // pred_region
          _
        $region78: #{agu_forward.1} parent=73 // pred_fallthru
          _
        %s292 = smul.u32 2, %s21
        %p293 = scmp.lt.s32.totalorder %s20, 1
        %s294 = scalar_select %p293, %s20, 1
        %p295 = scmp.lt.s32.totalorder %s292, 1
        %s296 = scalar_select %p295, %s292, 1
        %s297 = smul.addr %s294, 8
        %s298 = sadd.s32 %s296, %s297
        %s299 = smul.addr %s298, 8
        %s300 = scalar_lea.vmem %s0, %s299
        %p301 = pneg %p51
        %p302 = pneg %p48
        %s303 = sand.u32 %s74, 1
        %s304 = sand.u32 %s74, 1
        %s305 = smul.addr %s304, 32
        %s306 = scalar_lea.vmem [#allocation2], %s305
        %p307 = pneg %p87
        %p308 = pneg %p84
        %p309 = pneg %p108
        %p310 = pneg %p105
        %p311 = pneg %p129
        %p312 = pneg %p126
        %p313 = pneg %p150
        %p314 = pneg %p147
        %p315 = pneg %p178
        %p316 = pneg %p175
        %s317 = smul.u32 2, %s21
        %p318 = scmp.lt.s32.totalorder %s20, 1
        %s319 = scalar_select %p318, %s20, 1
        %p320 = scmp.lt.s32.totalorder %s317, 1
        %s321 = scalar_select %p320, %s317, 1
        %s322 = smul.addr %s319, 8
        %s323 = sadd.s32 %s321, %s322
        %s324 = smul.addr %s323, 4
        %s325 = scalar_lea.vmem %s5, %s324
        %s326 = smul.u32 2, %s21
        %p327 = scmp.lt.s32.totalorder %s20, 1
        %s328 = scalar_select %p327, %s20, 1
        %p329 = scmp.lt.s32.totalorder %s326, 1
        %s330 = scalar_select %p329, %s326, 1
        %s331 = smul.addr %s328, 8
        %s332 = sadd.s32 %s330, %s331
        %s333 = smul.addr %s332, 8
        %s334 = scalar_lea.vmem %s0, %s333
        %s335 = smul.u32 2, %s21
        %s336 = sadd.s32 %s21, 1
        %s337 = smul.u32 %s336, 2
        %p338 = scmp.lt.s32.totalorder %s337, 1
        %s339 = scalar_select %p338, %s337, 1
        %s340 = smul.u32 2, %s21
        %p341 = scmp.lt.s32.totalorder %s20, 1
        %s342 = scalar_select %p341, %s20, 1
        %p343 = scmp.lt.s32.totalorder %s340, 1
        %s344 = scalar_select %p343, %s340, 1
        %s345 = smul.addr %s342, 8
        %s346 = sadd.s32 %s344, %s345
        %s347 = smul.addr %s346, 4
        %s348 = scalar_lea.vmem %s5, %s347
        %s349 = smul.u32 2, %s21
        %v353 = vld [vmem:[%s334] sm:$0xff]
        %v354 = vld [vmem:[%s334 + $0x8] sm:$0xff]
        %v355 = vld [vmem:[%s334 + $0x10] sm:$0xff]
        %v356 = vld [vmem:[%s334 + $0x18] sm:$0xff]
        %v357 = vld [vmem:[%s334 + $0x20] sm:$0xff]
        %v358 = vld [vmem:[%s334 + $0x28] sm:$0xff]
        %v359 = vld [vmem:[%s334 + $0x30] sm:$0xff]
        %v360 = vld [vmem:[%s334 + $0x38] sm:$0xff]
        %p361 = scmp.eq.s32.totalorder %s21, 0
        %v362 = vld [vmem:[%s288] sm:$0xff]
        %v363 = vld [vmem:[%s288 + $0x8] sm:$0xff]
        %v364 = vld [vmem:[%s288 + $0x10] sm:$0xff]
        %v365 = vld [vmem:[%s288 + $0x18] sm:$0xff]
        %s366 = scalar_select %p361, 0.0, 1.0
        %v367 = vstv %s366
        %v368 = vmul.f32 %v362, %v367
        %v369 = vmul.f32 %v363, %v367
        %v370 = vmul.f32 %v364, %v367
        %v371 = vmul.f32 %v365, %v367
        %v372 = vadd.f32 %v353, %v355
        %v373 = vadd.f32 %v372, %v357
        %v374 = vadd.f32 %v373, %v359
        %v375 = vadd.f32 %v354, %v356
        %v376 = vadd.f32 %v375, %v358
        %v377 = vadd.f32 %v376, %v360
        %v378 = vadd.f32 %v368, %v369
        %v379 = vadd.f32 %v378, %v370
        %v380 = vadd.f32 %v379, %v371
        %v381 = vld [vmem:[%s2] sm:$0x3]
        %v382 = vpack.c.bf16 %v374, %v374
        %v383 = vpack.c.bf16 %v377, %v377
        %v384 = vpack.c.bf16 %v380, %v380
        %vm385 = vcmask 64512
        %v387 = vsel %vm385, %v381, 0
        %vm389 = vcmask 1043456
        %v391 = vsel %vm389, %v382, 0
        %v394 = vsel %vm389, %v383, 0
        %v397 = vsel %vm389, %v384, 0
        %399 = vmatprep.subr.bf16.mxu0 %v394
        %400 = vmatpush1.bf16.msra.mxu0 %v391
        %401 = vmatprep.subr.bf16.mxu0 0
        %402 = vmatpush1.bf16.msra.mxu0 0
        %403 = vmatprep.subr.bf16.mxu0 0
        %404 = vmatpush1.bf16.msra.mxu0 0
        %405 = vmatprep.subr.bf16.mxu0 0
        %406 = vmatpush1.bf16.msra.mxu0 0
        %407 = vmatprep.subr.bf16.mxu0 0
        %408 = vmatpush1.bf16.msra.mxu0 0
        %409 = vmatprep.subr.bf16.mxu0 0
        %410 = vmatpush1.bf16.msra.mxu0 0
        %411 = vmatprep.subr.bf16.mxu0 0
        %412 = vmatpush1.bf16.msra.mxu0 0
        %413 = vmatprep.subr.bf16.mxu0 0
        %414 = vmatpush1.bf16.msra.mxu0 0
        %415 = vmatprep.subr.bf16.mxu0 0
        %416 = vmatpush1.bf16.msra.mxu0 0
        %417 = vmatprep.subr.bf16.mxu0 0
        %418 = vmatpush1.bf16.msra.mxu0 0
        %419 = vmatprep.subr.bf16.mxu0 0
        %420 = vmatpush1.bf16.msra.mxu0 0
        %421 = vmatprep.subr.bf16.mxu0 0
        %422 = vmatpush1.bf16.msra.mxu0 0
        %423 = vmatprep.subr.bf16.mxu0 0
        %424 = vmatpush1.bf16.msra.mxu0 0
        %425 = vmatprep.subr.bf16.mxu0 0
        %426 = vmatpush1.bf16.msra.mxu0 0
        %427 = vmatprep.subr.bf16.mxu0 0
        %428 = vmatpush1.bf16.msra.mxu0 0
        %429 = vmatprep.subr.bf16.mxu0 0
        %430 = vmatpush1.bf16.msra.mxu0 0
        %431 = vmatprep.mubr.bf16.mxu0 0
        %432 = vmatmul.mubr.bf16.gmra.mrb[0].mxu0 %v387
        %v433 = vpop.f32.mrb[0].mxu0
        %v434 = vadd.f32 0.0, %v433
        %v435 = vpop.f32.mrb[0].mxu0
        %v436 = vadd.f32 0.0, %v435
        %v437 = vpop.f32.mrb[0].mxu0
        %v438 = vpop.f32.mrb[0].mxu0
        %439 = vdwg.mxu0
        %440 = vmatprep.subr.bf16.mxu0 0
        %441 = vmatpush1.bf16.msra.mxu0 %v397
        %442 = vmatprep.subr.bf16.mxu0 0
        %443 = vmatpush1.bf16.msra.mxu0 0
        %444 = vmatprep.subr.bf16.mxu0 0
        %445 = vmatpush1.bf16.msra.mxu0 0
        %446 = vmatprep.subr.bf16.mxu0 0
        %447 = vmatpush1.bf16.msra.mxu0 0
        %448 = vmatprep.subr.bf16.mxu0 0
        %449 = vmatpush1.bf16.msra.mxu0 0
        %450 = vmatprep.subr.bf16.mxu0 0
        %451 = vmatpush1.bf16.msra.mxu0 0
        %452 = vmatprep.subr.bf16.mxu0 0
        %453 = vmatpush1.bf16.msra.mxu0 0
        %454 = vmatprep.subr.bf16.mxu0 0
        %455 = vmatpush1.bf16.msra.mxu0 0
        %456 = vmatprep.subr.bf16.mxu0 0
        %457 = vmatpush1.bf16.msra.mxu0 0
        %458 = vmatprep.subr.bf16.mxu0 0
        %459 = vmatpush1.bf16.msra.mxu0 0
        %460 = vmatprep.subr.bf16.mxu0 0
        %461 = vmatpush1.bf16.msra.mxu0 0
        %462 = vmatprep.subr.bf16.mxu0 0
        %463 = vmatpush1.bf16.msra.mxu0 0
        %464 = vmatprep.subr.bf16.mxu0 0
        %465 = vmatpush1.bf16.msra.mxu0 0
        %466 = vmatprep.subr.bf16.mxu0 0
        %467 = vmatpush1.bf16.msra.mxu0 0
        %468 = vmatprep.subr.bf16.mxu0 0
        %469 = vmatpush1.bf16.msra.mxu0 0
        %470 = vmatprep.subr.bf16.mxu0 0
        %471 = vmatpush1.bf16.msra.mxu0 0
        %472 = vmatprep.mubr.bf16.mxu0 0
        %473 = vmatmul.mubr.bf16.gmra.mrb[0].mxu0 %v387
        %v474 = vpop.f32.mrb[0].mxu0
        %v475 = vadd.f32 0.0, %v474
        %v476 = vpop.f32.mrb[0].mxu0
        %v477 = vpop.f32.mrb[0].mxu0
        %v478 = vpop.f32.mrb[0].mxu0
        %479 = vdwg.mxu0
        %vm480 = vcmp.ge.f32.partialorder %v434, 0.0
        %vm481 = vcmp.ge.f32.partialorder %v436, 0.0
        %vm482 = vcmp.ge.f32.partialorder %v475, 0.0
        %v483 = vmul.f32 %v434, 0.2
        %v484 = vmul.f32 %v436, 0.2
        %v485 = vmul.f32 %v475, 0.2
        %v486 = vsel %vm480, %v434, %v483
        %v487 = vsel %vm481, %v436, %v484
        %v488 = vsel %vm482, %v475, %v485
        %v489 = vld [vmem:[%s3] sm:$0xf]
        %v490 = vld [vmem:[%s3 + $0x4] sm:$0xf]
        %v491 = vld [vmem:[%s3 + $0x8] sm:$0xf]
        %v492 = vld [vmem:[%s3 + $0xc] sm:$0xf]
        %v493 = vpack.c.bf16 %v486, %v486
        %v494 = vpack.c.bf16 %v487, %v487
        %v495 = vpack.c.bf16 %v488, %v488
        %v500 = vunpack.c.l.b16 %v489
        %v501 = vunpack.c.l.b16 %v490
        %v502 = vunpack.c.l.b16 %v491
        %v503 = vunpack.c.l.b16 %v492
        %v504 = vpack.c.b16 %v501, %v500
        %v505 = vpack.c.b16 %v503, %v502
        %vm506 = vcmask 31744
        %v508 = vsel %vm506, %v504, 0
        %v511 = vsel %vm506, %v505, 0
        %vm513 = vcmask 1041408
        %v515 = vsel %vm513, %v493, 0
        %v518 = vsel %vm513, %v494, 0
        %v521 = vsel %vm513, %v495, 0
        %523 = vmatprep.subr.bf16.mxu0 %v518
        %524 = vmatpush1.bf16.msra.mxu0 %v515
        %525 = vmatprep.subr.bf16.mxu0 0
        %526 = vmatpush1.bf16.msra.mxu0 0
        %527 = vmatprep.subr.bf16.mxu0 0
        %528 = vmatpush1.bf16.msra.mxu0 0
        %529 = vmatprep.subr.bf16.mxu0 0
        %530 = vmatpush1.bf16.msra.mxu0 0
        %531 = vmatprep.subr.bf16.mxu0 0
        %532 = vmatpush1.bf16.msra.mxu0 0
        %533 = vmatprep.subr.bf16.mxu0 0
        %534 = vmatpush1.bf16.msra.mxu0 0
        %535 = vmatprep.subr.bf16.mxu0 0
        %536 = vmatpush1.bf16.msra.mxu0 0
        %537 = vmatprep.subr.bf16.mxu0 0
        %538 = vmatpush1.bf16.msra.mxu0 0
        %539 = vmatprep.subr.bf16.mxu0 0
        %540 = vmatpush1.bf16.msra.mxu0 0
        %541 = vmatprep.subr.bf16.mxu0 0
        %542 = vmatpush1.bf16.msra.mxu0 0
        %543 = vmatprep.subr.bf16.mxu0 0
        %544 = vmatpush1.bf16.msra.mxu0 0
        %545 = vmatprep.subr.bf16.mxu0 0
        %546 = vmatpush1.bf16.msra.mxu0 0
        %547 = vmatprep.subr.bf16.mxu0 0
        %548 = vmatpush1.bf16.msra.mxu0 0
        %549 = vmatprep.subr.bf16.mxu0 0
        %550 = vmatpush1.bf16.msra.mxu0 0
        %551 = vmatprep.subr.bf16.mxu0 0
        %552 = vmatpush1.bf16.msra.mxu0 0
        %553 = vmatprep.subr.bf16.mxu0 0
        %554 = vmatpush1.bf16.msra.mxu0 0
        %555 = vmatprep.mubr.bf16.mxu0 0
        %556 = vmatmul.mubr.bf16.gmra.mrb[0].mxu0 %v508
        %v557 = vpop.f32.mrb[0].mxu0
        %v558 = vadd.f32 0.0, %v557
        %v559 = vpop.f32.mrb[0].mxu0
        %v560 = vadd.f32 0.0, %v559
        %v561 = vpop.f32.mrb[0].mxu0
        %v562 = vadd.f32 0.0, %v561
        %v563 = vpop.f32.mrb[0].mxu0
        %v564 = vadd.f32 0.0, %v563
        %565 = vmatprep.mubr.bf16.mxu0 0
        %566 = vmatmul.mubr.bf16.gmra.mrb[0].mxu0 %v511
        %v567 = vpop.f32.mrb[0].mxu0
        %v568 = vadd.f32 0.0, %v567
        %v569 = vpop.f32.mrb[0].mxu0
        %v570 = vadd.f32 0.0, %v569
        %v571 = vpop.f32.mrb[0].mxu0
        %v572 = vadd.f32 0.0, %v571
        %v573 = vpop.f32.mrb[0].mxu0
        %v574 = vadd.f32 0.0, %v573
        %575 = vdwg.mxu0
        %576 = vmatprep.subr.bf16.mxu0 0
        %577 = vmatpush1.bf16.msra.mxu0 %v521
        %578 = vmatprep.subr.bf16.mxu0 0
        %579 = vmatpush1.bf16.msra.mxu0 0
        %580 = vmatprep.subr.bf16.mxu0 0
        %581 = vmatpush1.bf16.msra.mxu0 0
        %582 = vmatprep.subr.bf16.mxu0 0
        %583 = vmatpush1.bf16.msra.mxu0 0
        %584 = vmatprep.subr.bf16.mxu0 0
        %585 = vmatpush1.bf16.msra.mxu0 0
        %586 = vmatprep.subr.bf16.mxu0 0
        %587 = vmatpush1.bf16.msra.mxu0 0
        %588 = vmatprep.subr.bf16.mxu0 0
        %589 = vmatpush1.bf16.msra.mxu0 0
        %590 = vmatprep.subr.bf16.mxu0 0
        %591 = vmatpush1.bf16.msra.mxu0 0
        %592 = vmatprep.subr.bf16.mxu0 0
        %593 = vmatpush1.bf16.msra.mxu0 0
        %594 = vmatprep.subr.bf16.mxu0 0
        %595 = vmatpush1.bf16.msra.mxu0 0
        %596 = vmatprep.subr.bf16.mxu0 0
        %597 = vmatpush1.bf16.msra.mxu0 0
        %598 = vmatprep.subr.bf16.mxu0 0
        %599 = vmatpush1.bf16.msra.mxu0 0
        %600 = vmatprep.subr.bf16.mxu0 0
        %601 = vmatpush1.bf16.msra.mxu0 0
        %602 = vmatprep.subr.bf16.mxu0 0
        %603 = vmatpush1.bf16.msra.mxu0 0
        %604 = vmatprep.subr.bf16.mxu0 0
        %605 = vmatpush1.bf16.msra.mxu0 0
        %606 = vmatprep.subr.bf16.mxu0 0
        %607 = vmatpush1.bf16.msra.mxu0 0
        %608 = vmatprep.mubr.bf16.mxu0 0
        %609 = vmatmul.mubr.bf16.gmra.mrb[0].mxu0 %v508
        %v610 = vpop.f32.mrb[0].mxu0
        %v611 = vadd.f32 0.0, %v610
        %v612 = vpop.f32.mrb[0].mxu0
        %v613 = vpop.f32.mrb[0].mxu0
        %v614 = vadd.f32 0.0, %v613
        %v615 = vpop.f32.mrb[0].mxu0
        %616 = vmatprep.mubr.bf16.mxu0 0
        %617 = vmatmul.mubr.bf16.gmra.mrb[0].mxu0 %v511
        %v618 = vpop.f32.mrb[0].mxu0
        %v619 = vadd.f32 0.0, %v618
        %v620 = vpop.f32.mrb[0].mxu0
        %v621 = vpop.f32.mrb[0].mxu0
        %v622 = vadd.f32 0.0, %v621
        %v623 = vpop.f32.mrb[0].mxu0
        %624 = vdwg.mxu0
        %v625 = vmax.f32 %v558, %v562
        %v626 = vmax.f32 %v560, %v564
        %v627 = vmax.f32 %v611, %v614
        %v628 = vmax.f32 %v625, %v568
        %v629 = vmax.f32 %v626, %v570
        %v630 = vmax.f32 %v627, %v619
        %v631 = vmax.f32 %v628, %v572
        %v632 = vmax.f32 %v629, %v574
        %v633 = vmax.f32 %v630, %v622
        %v634 = vsub.f32 %v558, %v631
        %v635 = vsub.f32 %v560, %v632
        %v636 = vsub.f32 %v611, %v633
        %v637 = vmul.f32 %v634, 1.442695
        %v638 = vpow.pop %v637
        %v639 = vmul.f32 %v635, 1.442695
        %v640 = vpow.pop %v639
        %v641 = vmul.f32 %v636, 1.442695
        %v642 = vpow.pop %v641
        %v643 = vsub.f32 %v562, %v631
        %v644 = vsub.f32 %v564, %v632
        %v645 = vsub.f32 %v614, %v633
        %v646 = vmul.f32 %v643, 1.442695
        %v647 = vpow.pop %v646
        %v648 = vmul.f32 %v644, 1.442695
        %v649 = vpow.pop %v648
        %v650 = vmul.f32 %v645, 1.442695
        %v651 = vpow.pop %v650
        %v652 = vsub.f32 %v568, %v631
        %v653 = vsub.f32 %v570, %v632
        %v654 = vsub.f32 %v619, %v633
        %v655 = vmul.f32 %v652, 1.442695
        %v656 = vpow.pop %v655
        %v657 = vmul.f32 %v653, 1.442695
        %v658 = vpow.pop %v657
        %v659 = vmul.f32 %v654, 1.442695
        %v660 = vpow.pop %v659
        %v661 = vsub.f32 %v572, %v631
        %v662 = vsub.f32 %v574, %v632
        %v663 = vsub.f32 %v622, %v633
        %v664 = vmul.f32 %v661, 1.442695
        %v665 = vpow.pop %v664
        %v666 = vmul.f32 %v662, 1.442695
        %v667 = vpow.pop %v666
        %v668 = vmul.f32 %v663, 1.442695
        %v669 = vpow.pop %v668
        %v670 = vadd.f32 %v638, %v647
        %v671 = vadd.f32 %v640, %v649
        %v672 = vadd.f32 %v642, %v651
        %v673 = vadd.f32 %v670, %v656
        %v674 = vadd.f32 %v671, %v658
        %v675 = vadd.f32 %v672, %v660
        %v676 = vadd.f32 %v673, %v665
        %v677 = vadd.f32 %v674, %v667
        %v678 = vadd.f32 %v675, %v669
        %v679 = vrcp.pop %v676
        %v680 = vmul.f32 1.0, %v679
        %v681 = vrcp.pop %v677
        %v682 = vmul.f32 1.0, %v681
        %v683 = vrcp.pop %v678
        %v684 = vmul.f32 1.0, %v683
        %v685 = vmul.f32 %v638, %v680
        %v686 = vmul.f32 %v640, %v682
        %v687 = vmul.f32 %v642, %v684
        %v688 = vmul.f32 %v353, %v685
        %v689 = vmul.f32 %v354, %v686
        %v690 = vmul.f32 %v368, %v687
        %v691 = vmul.f32 %v647, %v680
        %v692 = vmul.f32 %v649, %v682
        %v693 = vmul.f32 %v651, %v684
        %v694 = vmul.f32 %v355, %v691
        %v695 = vmul.f32 %v356, %v692
        %v696 = vmul.f32 %v369, %v693
        %v697 = vmul.f32 %v656, %v680
        %v698 = vmul.f32 %v658, %v682
        %v699 = vmul.f32 %v660, %v684
        %v700 = vmul.f32 %v357, %v697
        %v701 = vmul.f32 %v358, %v698
        %v702 = vmul.f32 %v370, %v699
        %v703 = vmul.f32 %v665, %v680
        %v704 = vmul.f32 %v667, %v682
        %v705 = vmul.f32 %v669, %v684
        %v706 = vmul.f32 %v359, %v703
        %v707 = vmul.f32 %v360, %v704
        %v708 = vmul.f32 %v371, %v705
        %v709 = vpack.c.bf16 %v694, %v688
        %v710 = vpack.c.bf16 %v695, %v689
        %v711 = vpack.c.bf16 %v696, %v690
        %v712 = vpack.c.bf16 %v706, %v700
        %v713 = vpack.c.bf16 %v707, %v701
        %v714 = vpack.c.bf16 %v708, %v702
        %v715 = vlaneseq
        %v716 = vand.u32 %v715, 127
        %v717 = vadd.s32 %v716, 128
        %v718 = vadd.s32 %v716, 256
        %vm719 = vcmp.lt.s32.totalorder %v716, 0
        %v720 = vsub.s32 0, %v716
        %v721 = vsel %vm719, %v720, %v716
        %v722 = vshrl.u32 %v721, 4
        %v723 = vand.u32 %v721, 15
        %v724 = vsub.s32 0, %v723
        %v725 = vsel %vm719, %v724, %v723
        %vm726 = vcmp.lt.s32.totalorder %v717, 0
        %v727 = vsub.s32 0, %v717
        %v728 = vsel %vm726, %v727, %v717
        %v729 = vshrl.u32 %v728, 4
        %v730 = vand.u32 %v728, 15
        %v731 = vsub.s32 0, %v730
        %v732 = vsel %vm726, %v731, %v730
        %vm733 = vcmp.lt.s32.totalorder %v718, 0
        %v734 = vsub.s32 0, %v718
        %v735 = vsel %vm733, %v734, %v718
        %v736 = vshrl.u32 %v735, 4
        %v737 = vand.u32 %v735, 15
        %v738 = vsub.s32 0, %v737
        %v739 = vsel %vm733, %v738, %v737
        %vm740 = vcmp.ne.s32.totalorder %v725, 0
        %vm741 = vcmp.ne.s32.totalorder %v732, 0
        %vm742 = vcmp.ne.s32.totalorder %v739, 0
        %vm743 = vcmp.lt.s32.totalorder %v725, 0
        %vm744 = vcmp.lt.s32.totalorder %v732, 0
        %vm745 = vcmp.lt.s32.totalorder %v739, 0
        %vm746 = vmand %vm743, %vm740
        %vm747 = vmand %vm744, %vm741
        %vm748 = vmand %vm745, %vm742
        %v749 = vadd.s32 %v725, 16
        %v750 = vadd.s32 %v732, 16
        %v751 = vadd.s32 %v739, 16
        %v752 = vsel %vm746, %v749, %v725
        %v753 = vsel %vm747, %v750, %v732
        %v754 = vsel %vm748, %v751, %v739
        %vm755 = vcmp.ne.s32.totalorder %v752, 15
        %vm756 = vcmp.ne.s32.totalorder %v753, 15
        %vm757 = vcmp.ne.s32.totalorder %v754, 15
        %764 = vrot.lane.b32.xlu0 %v709, 127
        %v765 = vpop.permute.xlu0 %764
        %766 = vrot.lane.b32.xlu0 %v710, 127
        %v767 = vpop.permute.xlu0 %766
        %768 = vrot.lane.b32.xlu0 %v711, 127
        %v769 = vpop.permute.xlu0 %768
        %770 = vrot.lane.b32.xlu0 %v712, 127
        %v771 = vpop.permute.xlu0 %770
        %772 = vrot.lane.b32.xlu0 %v713, 127
        %v773 = vpop.permute.xlu0 %772
        %774 = vrot.lane.b32.xlu0 %v714, 127
        %v775 = vpop.permute.xlu0 %774
        %vm776 = vcmask 1039360
        %v777 = vsel %vm776, %v765, %v767
        %v778 = vsel %vm776, %v767, %v769
        %v779 = vsel %vm776, %v771, %v773
        %v780 = vsel %vm776, %v773, %v775
        %vm785 = vcmask 1039360
        %v788 = vsel %vm785, %v769, 0
        %v791 = vsel %vm785, %v775, 0
        %v793 = vsel %vm755, 1, 0
        %v794 = vsel %vm756, 1, 0
        %v795 = vsel %vm757, 1, 0
        %vm796 = vcmp.eq.s32.totalorder %v793, 1
        %vm797 = vcmp.eq.s32.totalorder %v794, 1
        %vm798 = vcmp.eq.s32.totalorder %v795, 1
        %vm799 = vmpackc.low %vm797, %vm796
        %vm800 = vmpackc.low %vm798, %vm798
        %v801 = vsel %vm799, 65537, 0
        %v802 = vsel %vm800, 65537, 0
        %v803 = vlaneseq
        %v804 = vshrl.u32 %v803, 7
        %v805 = vsub.s32 0, %v804
        %v806 = vrot.slane %v801, %v805
        %v807 = vlaneseq
        %v808 = vshrl.u32 %v807, 7
        %v809 = vsub.s32 4, %v808
        %v810 = vrot.slane %v801, %v809
        %v811 = vlaneseq
        %v812 = vshrl.u32 %v811, 7
        %v813 = vsub.s32 0, %v812
        %v814 = vrot.slane %v802, %v813
        %vm815 = vcmp.ne.s16.totalorder %v806, 0
        %vm816 = vcmp.ne.s16.totalorder %v810, 0
        %vm817 = vcmp.ne.s16.totalorder %v814, 0
        %v818 = vsel %vm815, %v777, 0
        %v819 = vsel %vm816, %v778, 0
        %v820 = vsel %vm817, %v788, 0
        %v821 = vsel %vm815, %v779, 0
        %v822 = vsel %vm816, %v780, 0
        %v823 = vsel %vm817, %v791, 0
        %824 = vrot.lane.b32.xlu0 %v709, 112
        %v825 = vpop.permute.xlu0 %824
        %826 = vrot.lane.b32.xlu0 %v710, 112
        %v827 = vpop.permute.xlu0 %826
        %828 = vrot.lane.b32.xlu0 %v711, 112
        %v829 = vpop.permute.xlu0 %828
        %830 = vrot.lane.b32.xlu0 %v712, 112
        %v831 = vpop.permute.xlu0 %830
        %832 = vrot.lane.b32.xlu0 %v713, 112
        %v833 = vpop.permute.xlu0 %832
        %834 = vrot.lane.b32.xlu0 %v714, 112
        %v835 = vpop.permute.xlu0 %834
        %vm836 = vcmask 916480
        %v837 = vsel %vm836, %v825, %v827
        %v838 = vsel %vm836, %v827, %v829
        %v839 = vsel %vm836, %v831, %v833
        %v840 = vsel %vm836, %v833, %v835
        %851 = vrot.lane.b32.xlu0 %v818, 112
        %v852 = vpop.permute.xlu0 %851
        %853 = vrot.lane.b32.xlu0 %v819, 112
        %v854 = vpop.permute.xlu0 %853
        %855 = vrot.lane.b32.xlu0 %v820, 112
        %v856 = vpop.permute.xlu0 %855
        %857 = vrot.lane.b32.xlu0 %v821, 112
        %v858 = vpop.permute.xlu0 %857
        %859 = vrot.lane.b32.xlu0 %v822, 112
        %v860 = vpop.permute.xlu0 %859
        %861 = vrot.lane.b32.xlu0 %v823, 112
        %v862 = vpop.permute.xlu0 %861
        %v863 = vsel %vm836, %v852, %v854
        %v864 = vsel %vm836, %v854, %v856
        %v865 = vsel %vm836, %v858, %v860
        %v866 = vsel %vm836, %v860, %v862
        %v871 = vld [vmem:[%s4] sm:$0xf]
        %v872 = vld [vmem:[%s4 + $0x4] sm:$0xf]
        %v873 = vld [vmem:[%s4 + $0x8] sm:$0xf]
        %v874 = vld [vmem:[%s4 + $0xc] sm:$0xf]
        %v879 = vunpack.c.l.b16 %v871
        %v880 = vunpack.c.l.b16 %v872
        %v881 = vunpack.c.l.b16 %v873
        %v882 = vunpack.c.l.b16 %v874
        %v883 = vpack.c.b16 %v880, %v879
        %v884 = vpack.c.b16 %v882, %v881
        %887 = vmatprep.subr.bf16.mxu0 %v710
        %888 = vmatpush1.bf16.msra.mxu0 %v709
        %889 = vmatprep.subr.bf16.mxu0 %v713
        %890 = vmatpush1.bf16.msra.mxu0 %v712
        %891 = vmatprep.subr.bf16.mxu0 %v819
        %892 = vmatpush1.bf16.msra.mxu0 %v818
        %893 = vmatprep.subr.bf16.mxu0 %v822
        %894 = vmatpush1.bf16.msra.mxu0 %v821
        %895 = vmatprep.subr.bf16.mxu0 %v838
        %896 = vmatpush1.bf16.msra.mxu0 %v837
        %897 = vmatprep.subr.bf16.mxu0 %v840
        %898 = vmatpush1.bf16.msra.mxu0 %v839
        %899 = vmatprep.subr.bf16.mxu0 %v864
        %900 = vmatpush1.bf16.msra.mxu0 %v863
        %901 = vmatprep.subr.bf16.mxu0 %v866
        %902 = vmatpush1.bf16.msra.mxu0 %v865
        %903 = vmatprep.subr.bf16.mxu0 0
        %904 = vmatpush1.bf16.msra.mxu0 0
        %905 = vmatprep.subr.bf16.mxu0 0
        %906 = vmatpush1.bf16.msra.mxu0 0
        %907 = vmatprep.subr.bf16.mxu0 0
        %908 = vmatpush1.bf16.msra.mxu0 0
        %909 = vmatprep.subr.bf16.mxu0 0
        %910 = vmatpush1.bf16.msra.mxu0 0
        %911 = vmatprep.subr.bf16.mxu0 0
        %912 = vmatpush1.bf16.msra.mxu0 0
        %913 = vmatprep.subr.bf16.mxu0 0
        %914 = vmatpush1.bf16.msra.mxu0 0
        %915 = vmatprep.subr.bf16.mxu0 0
        %916 = vmatpush1.bf16.msra.mxu0 0
        %917 = vmatprep.subr.bf16.mxu0 0
        %918 = vmatpush1.bf16.msra.mxu0 0
        %919 = vmatprep.mubr.bf16.mxu0 0
        %920 = vmatmul.mubr.bf16.gmra.mrb[0].mxu0 %v883
        %v921 = vpop.f32.mrb[0].mxu0
        %v922 = vadd.f32 0.0, %v921
        %v923 = vpop.f32.mrb[0].mxu0
        %v924 = vadd.f32 0.0, %v923
        %v925 = vpop.f32.mrb[0].mxu0
        %v926 = vadd.f32 0.0, %v925
        %v927 = vpop.f32.mrb[0].mxu0
        %v928 = vadd.f32 0.0, %v927
        %929 = vmatprep.mubr.bf16.mxu0 0
        %930 = vmatmul.mubr.bf16.gmra.mrb[0].mxu0 %v884
        %v931 = vpop.f32.mrb[0].mxu0
        %v932 = vadd.f32 0.0, %v931
        %v933 = vpop.f32.mrb[0].mxu0
        %v934 = vadd.f32 0.0, %v933
        %v935 = vpop.f32.mrb[0].mxu0
        %v936 = vadd.f32 0.0, %v935
        %v937 = vpop.f32.mrb[0].mxu0
        %v938 = vadd.f32 0.0, %v937
        %939 = vdwg.mxu0
        %v940 = vpack.c.bf16 %v926, %v922
        %v941 = vpack.c.bf16 %v928, %v924
        %v942 = vpack.c.bf16 %v936, %v932
        %v943 = vpack.c.bf16 %v938, %v934
        %v948 = vunpack.c.l.b16 %v940
        %v949 = vunpack.c.l.b16 %v941
        %v950 = vunpack.c.h.b16 %v940
        %v951 = vunpack.c.h.b16 %v941
        %v952 = vunpack.c.l.b16 %v942
        %v953 = vunpack.c.l.b16 %v943
        %v954 = vunpack.c.h.b16 %v942
        %v955 = vunpack.c.h.b16 %v943
        %v956 = vpack.c.b16 %v949, %v948
        %v957 = vpack.c.b16 %v951, %v950
        %v958 = vpack.c.b16 %v953, %v952
        %v959 = vpack.c.b16 %v955, %v954
        %964 = vst [vmem:[%s348] sm:$0xff] %v956
        %965 = vst [vmem:[%s348 + $0x8] sm:$0xff] %v957
        %966 = vst [vmem:[%s348 + $0x10] sm:$0xff] %v958
        %967 = vst [vmem:[%s348 + $0x18] sm:$0xff] %v959
        %s968 = smul.u32 2, %s21
        %p969 = scmp.lt.s32.totalorder %s20, 1
        %s970 = scalar_select %p969, %s20, 1
        %p971 = scmp.lt.s32.totalorder %s968, 1
        %s972 = scalar_select %p971, %s968, 1
        %s973 = smul.addr %s970, 8
        %s974 = sadd.s32 %s972, %s973
        %s975 = smul.addr %s974, 4
        %s976 = scalar_lea.vmem %s5, %s975
        // Predicated region
        $region79: #{agu_forward.1} parent=73 // pred_check
          %p977 = pneg %p175
        $region80: #{agu_forward.1} parent=73 // pred_check_branch
          %979 = sbr.rel (%p977) target = $region82
        $region81: #{agu_forward.1} parent=73 // pred_region
          %s980 = smul.u32 2, %s21
        $region82: #{agu_forward.1} parent=73 // pred_fallthru
          _
      $region74: #{agu_forward.1} parent=5 // pred_fallthru
        _
      %p981 = scmp.le.s32.totalorder 2, %s11
      // Predicated region
      $region83: #{agu_forward.1} parent=5 // pred_check
        %p982 = pneg %p981
      $region84: #{agu_forward.1} parent=5 // pred_check_branch
        %984 = sbr.rel (%p982) target = $region86
      $region85: #{agu_forward.1} parent=5 // pred_region
        %s985 = ssub.s32 %s11, 2
        // Predicated region
        $region87: #{agu_forward.1} parent=85 // pred_check
          %p986 = pneg %p181
        $region88: #{agu_forward.1} parent=85 // pred_check_branch
          %988 = sbr.rel (%p986) target = $region90
        $region89: #{agu_forward.1} parent=85 // pred_region
          %s989 = smul.u32 2, %s23
          %p990 = scmp.lt.s32.totalorder %s22, 1
          %s991 = scalar_select %p990, %s22, 1
          %p992 = scmp.lt.s32.totalorder %s989, 1
          %s993 = scalar_select %p992, %s989, 1
          %s994 = smul.addr %s991, 8
          %s995 = sadd.s32 %s993, %s994
          %s996 = smul.addr %s995, 4
          %s997 = scalar_lea.vmem %s5, %s996
        $region90: #{agu_forward.1} parent=85 // pred_fallthru
          _
      $region86: #{agu_forward.1} parent=5 // pred_fallthru
        _
    $region6: #{agu_forward.1} parent=1 // loop_footer
      %s15 = sadd.s32 1, %s11
    $region7: #{agu_forward.1} parent=1 // loop_footer_branch
      %10 = sbr.rel target = $region3
    $region8: #{agu_forward.1} parent=1 // loop_exit
      _

</llo_original>
